<compile_context>
chip_gen: v5e
topology: v5e:2x2
jax: 0.10.0
libtpu: 0.0.40
codegen_flags: <defaults>
</compile_context>

<pallas_src>
import functools
from typing import NamedTuple

import numpy as np
import jax
import jax.numpy as jnp
from jax.experimental import pallas as pl
from jax.experimental.pallas import tpu as pltpu


# ---------------------------------------------------------------------------
# Helpers: rounding, per-generation VMEM budget, tile selection.
# ---------------------------------------------------------------------------
def _round_up(x, m):
    return ((x + m - 1) // m) * m


def _vmem_capacity_bytes():
    try:
        return int(pltpu.get_tpu_info().vmem_capacity_bytes)
    except Exception:
        return 64 * 1024 * 1024      # conservative fallback: v7x per-TensorCore


def _vmem_limit_bytes():
    cap = _vmem_capacity_bytes()
    # ~3/4 of physical with compiler headroom: ~48 MiB on v7x (64 MiB/TC),
    # 96 MiB on v5e/v6e (128 MiB).
    return min(cap * 3 // 4, 100 * 1024 * 1024)


def choose_tiles(n, d_out, *, tm=2048, tk=2048,
                 adj_dtype=jnp.bfloat16, support_dtype=jnp.bfloat16):
    """Pick aggregation tiles (tm, tk) that fit the per-generation VMEM budget.

    Use the largest d_out among the GCN layers that share this adjacency.
    """
    budget = _vmem_limit_bytes() - 4 * 1024 * 1024
    adj_it = np.dtype(adj_dtype).itemsize
    sup_it = np.dtype(support_dtype).itemsize
    n128 = _round_up(n, 128)
    d_out_p = _round_up(d_out, 128)
    tm = _round_up(min(tm, n128), 128)
    tk = _round_up(min(tk, n128), 128)

    def cost(tm_, tk_):
        return (2 * tm_ * tk_ * adj_it             # A tile, double-buffered
                + 2 * tk_ * d_out_p * sup_it       # support tile (worst case: tiled)
                + 2 * tm_ * d_out_p * 4            # output tile, double-buffered
                + tm_ * d_out_p * 4                # f32 accumulator
                + 2 * d_out_p * 4)                 # bias

    # Shrink tk first (never tm or d_out), then tm.
    while cost(tm, tk) > budget and tk > 128:
        tk = max(128, _round_up(tk // 2, 128))
    while cost(tm, tk) > budget and tm > 128:
        tm = max(128, _round_up(tm // 2, 128))
    return tm, tk


# ---------------------------------------------------------------------------
# One-time per-graph adjacency preprocessing (hoisted out of the forward path).
# ---------------------------------------------------------------------------
class PreparedAdjacency(NamedTuple):
    adj: jax.Array       # (n_m, n_k) zero-padded adjacency, adj dtype
    nnz: jax.Array       # (nb_m,) int32: nonzero column-blocks per row-block
    col_idx: jax.Array   # (nb_m * max_nnz,) int32: block-CSR column indices
    n: int               # true node count
    tm: int
    tk: int
    max_nnz: int


def prepare_adjacency(adjacency, *, tm, tk, adj_dtype=jnp.bfloat16):
    """Host-side, once per graph: pad, cast, and build block-CSR metadata.

    Only a single padded device copy of A (in adj_dtype) is ever materialized;
    the N^2 metadata passes happen on the host and are amortized across calls.
    """
    adj_np = np.asarray(jax.device_get(adjacency), dtype=np.float32)
    n = adj_np.shape[0]
    n_m = _round_up(n, tm)
    n_k = _round_up(n, tk)
    adj_pad = np.zeros((n_m, n_k), dtype=np.float32)
    adj_pad[:n, :n] = adj_np

    nb_m, nb_k = n_m // tm, n_k // tk
    blocks = adj_pad.reshape(nb_m, tm, nb_k, tk)
    block_mask = np.abs(blocks).sum(axis=(1, 3)) > 0          # (nb_m, nb_k)
    nnz = block_mask.sum(axis=1).astype(np.int32)
    max_nnz = max(1, int(nnz.max()))
    col_idx = np.zeros((nb_m, max_nnz), dtype=np.int32)
    for i in range(nb_m):
        cols = np.nonzero(block_mask[i])[0].astype(np.int32)
        if cols.size:
            col_idx[i, :cols.size] = cols
            col_idx[i, cols.size:] = cols[-1]   # repeat last -> padded-step DMA elided

    adj_dev = jnp.asarray(adj_pad, dtype=adj_dtype)   # single padded device copy
    return PreparedAdjacency(adj=adj_dev,
                             nnz=jnp.asarray(nnz),
                             col_idx=jnp.asarray(col_idx.reshape(-1)),
                             n=n, tm=tm, tk=tk, max_nnz=max_nnz)


# ---------------------------------------------------------------------------
# Projection kernel: support = X @ W (tiny vs aggregation, computed once).
# ---------------------------------------------------------------------------
def _proj_kernel(x_ref, w_ref, o_ref):
    o_ref[...] = jnp.dot(
        x_ref[...], w_ref[...], preferred_element_type=jnp.float32
    ).astype(o_ref.dtype)


def _project(x, weight, *, tile_rows, out_dtype, vmem_limit):
    n, d_in = x.shape
    d_out = weight.shape[1]
    # Guard wide layers (v7x's 64 MiB): tile W over d_out if the whole weight
    # block is big; otherwise keep W resident across row tiles.
    if d_in * d_out * 4 > 4 * 1024 * 1024 and d_out % 512 == 0:
        tile_cols = 512
    else:
        tile_cols = d_out
    return pl.pallas_call(
        _proj_kernel,
        out_shape=jax.ShapeDtypeStruct((n, d_out), out_dtype),
        grid_spec=pltpu.PrefetchScalarGridSpec(
            num_scalar_prefetch=0,
            grid=(n // tile_rows, d_out // tile_cols),
            in_specs=[
                pl.BlockSpec((tile_rows, d_in), lambda i, j: (i, 0)),
                pl.BlockSpec((d_in, tile_cols), lambda i, j: (0, j)),
            ],
            out_specs=pl.BlockSpec((tile_rows, tile_cols), lambda i, j: (i, j)),
        ),
        compiler_params=pltpu.CompilerParams(
            dimension_semantics=("parallel", "parallel"),
            vmem_limit_bytes=vmem_limit,
        ),
    )(x, weight)


# ---------------------------------------------------------------------------
# Aggregation kernel: output = A @ support (+ bias), block-CSR accumulator.
# ---------------------------------------------------------------------------
def _agg_kernel(nnz_ref, col_ref, *refs, max_nnz, tk, resident, has_bias):
    if has_bias:
        adj_ref, sup_ref, b_ref, o_ref, acc_ref = refs
    else:
        adj_ref, sup_ref, o_ref, acc_ref = refs
        b_ref = None

    i = pl.program_id(0)
    k = pl.program_id(1)

    @pl.when(k == 0)
    def _():
        acc_ref[...] = jnp.zeros_like(acc_ref)

    @pl.when(k < nnz_ref[i])          # block-CSR: skip ragged padding steps
    def _():
        if resident:
            # Support lives whole in VMEM; slice the K-tile dynamically.
            start = pl.multiple_of(col_ref[i * max_nnz + k] * tk, tk)
            sup = sup_ref[pl.ds(start, tk), :]
        else:
            sup = sup_ref[...]
        acc_ref[...] += jnp.dot(adj_ref[...], sup,
                                preferred_element_type=jnp.float32)

    @pl.when(k == pl.num_programs(1) - 1)
    def _():
        out = acc_ref[...]
        if has_bias:
            out = out + b_ref[...]
        o_ref[...] = out.astype(o_ref.dtype)


# ---------------------------------------------------------------------------
# Public forward: A @ (X @ W) (+ bias)   ==  GraphConvolution.forward
# ---------------------------------------------------------------------------
def graph_convolution(adjacency, x, weight, bias=None, *,
                      tm=2048, tk=2048,
                      adj_dtype=jnp.bfloat16, support_dtype=jnp.bfloat16,
                      force_tiled_support=False):
    """GCN forward.

    adjacency: PreparedAdjacency (preferred: prepare once per graph) or a
               dense [N, N] array (prepared internally, pays preprocessing
               per call).
    x: [N, D_in], weight: [D_in, D_out], bias: [D_out] or None.
    Returns [N, D_out] float32.
    """
    n, d_in = x.shape
    d_out = weight.shape[1]

    if isinstance(adjacency, PreparedAdjacency):
        prep = adjacency
    else:
        tm_, tk_ = choose_tiles(n, d_out, tm=tm, tk=tk,
                                adj_dtype=adj_dtype, support_dtype=support_dtype)
        prep = prepare_adjacency(adjacency, tm=tm_, tk=tk_, adj_dtype=adj_dtype)

    tm, tk = prep.tm, prep.tk
    max_nnz = prep.max_nnz
    n_m, n_k = prep.adj.shape
    nb_m = n_m // tm

    vmem_limit = _vmem_limit_bytes()
    budget = vmem_limit - 4 * 1024 * 1024

    # Lane-dense output: pad d_out to a multiple of 128 (zero weight / bias
    # columns), slice back at the end.
    d_out_p = _round_up(d_out, 128)
    w_p = jnp.zeros((d_in, d_out_p), jnp.float32).at[:, :d_out].set(
        weight.astype(jnp.float32))
    x_p = jnp.zeros((n_k, d_in), jnp.float32).at[:n, :].set(x.astype(jnp.float32))

    # support = X @ W, computed once, emitted directly in support_dtype.
    if tk > 512 and tk % 512 == 0:
        proj_rows = 512
    else:
        proj_rows = tk
    support = _project(x_p, w_p, tile_rows=proj_rows, out_dtype=support_dtype,
                       vmem_limit=vmem_limit)

    # Keep support fully VMEM-resident when it fits (Pallas still allocates 2
    # pipeline buffers for a constant-index block, so budget it at 2x).
    adj_it = np.dtype(adj_dtype).itemsize
    sup_it = np.dtype(support_dtype).itemsize
    fixed_cost = (2 * tm * tk * adj_it + 2 * tm * d_out_p * 4
                  + tm * d_out_p * 4 + 2 * d_out_p * 4)
    resident = (not force_tiled_support) and \
        (fixed_cost + 2 * n_k * d_out_p * sup_it <= budget)

    adj_map = lambda i, k, nnz, col: (i, col[i * max_nnz + k])
    out_map = lambda i, k, nnz, col: (i, 0)
    if resident:
        sup_spec = pl.BlockSpec((n_k, d_out_p), lambda i, k, nnz, col: (0, 0))
    else:
        sup_spec = pl.BlockSpec((tk, d_out_p),
                                lambda i, k, nnz, col: (col[i * max_nnz + k], 0))

    has_bias = bias is not None
    kernel = functools.partial(_agg_kernel, max_nnz=max_nnz, tk=tk,
                               resident=resident, has_bias=has_bias)
    in_specs = [pl.BlockSpec((tm, tk), adj_map), sup_spec]
    operands = [prep.adj, support]
    if has_bias:
        b_p = jnp.zeros((1, d_out_p), jnp.float32).at[0, :d_out].set(
            bias.astype(jnp.float32))
        in_specs.append(pl.BlockSpec((1, d_out_p), lambda i, k, nnz, col: (0, 0)))
        operands.append(b_p)

    out_p = pl.pallas_call(
        kernel,
        out_shape=jax.ShapeDtypeStruct((n_m, d_out_p), jnp.float32),
        grid_spec=pltpu.PrefetchScalarGridSpec(
            num_scalar_prefetch=2,
            grid=(nb_m, max_nnz),                  # reduction axis last
            in_specs=in_specs,
            out_specs=pl.BlockSpec((tm, d_out_p), out_map),
            scratch_shapes=[pltpu.VMEM((tm, d_out_p), jnp.float32)],
        ),
        compiler_params=pltpu.CompilerParams(
            # Row tiles are independent -> megacore-shardable; the block-CSR
            # reduction axis stays "arbitrary".
            dimension_semantics=("parallel", "arbitrary"),
            vmem_limit_bytes=vmem_limit,
        ),
    )(prep.nnz, prep.col_idx, *operands)

    return out_p[:prep.n, :d_out]


if __name__ == "__main__":
    key = jax.random.PRNGKey(0)
    k_adj, k_x, k_w, k_b = jax.random.split(key, 4)

    # Small but tiled sizes: N=256 with 128x128 tiles -> (2, 2) block grid, so
    # block-CSR skipping, K-accumulation, resident-support slicing, d_out
    # padding (64 -> 128 lanes) and the bias epilogue all exercise.
    N, D_IN, D_OUT = 256, 64, 64
    TM = TK = 128

    # ~5%-dense 0/1 adjacency (dense stand-in for the sparse CSR matrix), with
    # one all-empty 128x128 block so block-CSR genuinely skips a step.
    adj = (jax.random.uniform(k_adj, (N, N)) < 0.05).astype(jnp.float32)
    adj = adj.at[:128, 128:].set(0.0)

    x = jax.random.normal(k_x, (N, D_IN), dtype=jnp.float32)

    # weight ~ kaiming_uniform_ (fan_in=D_IN); bias nonzero so the bias path is
    # actually verified (reset_parameters() would zero it).
    bound = (6.0 / D_IN) ** 0.5
    weight = jax.random.uniform(k_w, (D_IN, D_OUT), minval=-bound, maxval=bound,
                                dtype=jnp.float32)
    bias = 0.1 * jax.random.normal(k_b, (D_OUT,), dtype=jnp.float32)

    # One-time per-graph preprocessing (hoisted out of the forward path).
    tm, tk = choose_tiles(N, D_OUT, tm=TM, tk=TK)
    prep = prepare_adjacency(adj, tm=tm, tk=tk)

    ref = adj @ (x @ weight) + bias[None, :]
    ref_nb = adj @ (x @ weight)

    # --- bias variant, resident-support path ---
    out = jax.block_until_ready(graph_convolution(prep, x, weight, bias))
    assert out.shape == (N, D_OUT)
    err = float(jnp.max(jnp.abs(out - ref)) / (jnp.max(jnp.abs(ref)) + 1e-6))
    assert err < 2e-2, f"bias/resident: max relative error {err}"

    # --- no-bias variant, tiled (non-resident) support path ---
    out_nb = jax.block_until_ready(
        graph_convolution(prep, x, weight, None, force_tiled_support=True))
    assert out_nb.shape == (N, D_OUT)
    err_nb = float(jnp.max(jnp.abs(out_nb - ref_nb)) /
                   (jnp.max(jnp.abs(ref_nb)) + 1e-6))
    assert err_nb < 2e-2, f"no-bias/tiled: max relative error {err_nb}"

    print("KERNEL_OK")
</pallas_src>

<mosaic_0001>
module attributes {stable_mosaic.version = 11 : i64} {
  func.func @_proj_kernel(%arg0: i32, %arg1: i32, %arg2: memref<128x64xf32, #tpu.memory_space<vmem>>, %arg3: memref<64x128xf32, #tpu.memory_space<vmem>>, %arg4: memref<128x128xbf16, #tpu.memory_space<vmem>>) attributes {dimension_semantics = [#tpu.dimension_semantics<parallel>, #tpu.dimension_semantics<parallel>], iteration_bounds = array<i64: 2, 1>, scalar_prefetch = 0 : i64, scratch_operands = 0 : i64, tpu.core_type = #tpu.core_type<tc>, window_params = [{transform_indices = @transform_0, window_bounds = array<i64: 128, 64>}, {transform_indices = @transform_1, window_bounds = array<i64: 64, 128>}, {transform_indices = @transform_2, window_bounds = array<i64: 128, 128>}]} {
    %c0 = arith.constant 0 : index
    %c0_0 = arith.constant 0 : index
    %0 = vector.load %arg2[%c0, %c0_0] : memref<128x64xf32, #tpu.memory_space<vmem>>, vector<128x64xf32>
    %c0_1 = arith.constant 0 : index
    %c0_2 = arith.constant 0 : index
    %1 = vector.load %arg3[%c0_1, %c0_2] : memref<64x128xf32, #tpu.memory_space<vmem>>, vector<64x128xf32>
    %cst = arith.constant dense<0.000000e+00> : vector<128x128xf32>
    %2 = tpu.matmul %0, %1, %cst {dimension_numbers = #tpu.dot_dimension_numbers<[1], [0], [0], [1], [0, 0, 1, 1], [], []>} : vector<128x64xf32>, vector<64x128xf32>, vector<128x128xf32> -> vector<128x128xf32>
    %3 = arith.truncf %2 : vector<128x128xf32> to vector<128x128xbf16>
    %c0_3 = arith.constant 0 : index
    %c0_4 = arith.constant 0 : index
    %4 = vector.load %arg4[%c0_3, %c0_4] : memref<128x128xbf16, #tpu.memory_space<vmem>>, vector<128x128xbf16>
    tpu.vector_store %arg4[%c0_3, %c0_4], %3 {strides = array<i32>} : memref<128x128xbf16, #tpu.memory_space<vmem>>, vector<128x128xbf16>,
    return
  }
  func.func @transform_0(%arg0: i32, %arg1: i32) -> (i32, i32) {
    %c0_i32 = arith.constant 0 : i32
    %c0_i32_0 = arith.constant 0 : i32
    return %arg0, %c0_i32 : i32, i32
  }
  func.func @transform_1(%arg0: i32, %arg1: i32) -> (i32, i32) {
    %c0_i32 = arith.constant 0 : i32
    %c0_i32_0 = arith.constant 0 : i32
    return %c0_i32, %arg1 : i32, i32
  }
  func.func @transform_2(%arg0: i32, %arg1: i32) -> (i32, i32) {
    %c0_i32 = arith.constant 0 : i32
    return %arg0, %arg1 : i32, i32
  }
}

</mosaic_0001>

<llo_original>
// kernel: tpu_custom_call.1
$region0: #{tpu_custom_call.1}
  #allocation0 [shape = 'u32[]', space=smem, size = 0x4, offset = 0x4, fixed_abs, tag = 'smem constant byte address 0x4 - core index']
  #allocation1 [shape = 'u32[72,128]{1,0:T(1,128)}', space=vmem, size = 0x9000, scoped, tag = 'internal scratch']
  %s0 = inlined_call_operand.vmem [shape: f32[256,64], index: 0, kind: input, shape index: {}]
  %s1 = inlined_call_operand.vmem [shape: f32[64,128], index: 1, kind: input, shape index: {}]
  %s2 = inlined_call_operand.hbm [shape: bf16[256,128], index: 2, kind: output, shape index: {}]
  %s3 = sld [smem:[#allocation0]]
  $region41: #{tpu_custom_call.1} parent=0
    _
  %s5 = ssub.s32 1, %s3
  %s6 = scalar_select 0, %s5, %s3
  $region1: #{tpu_custom_call.1} parent=0
    #allocation2 [shape = 'u8[65536]{0}', space=vmem, size = 0x10000, scoped, tag = 'output window, operand 0']
    #allocation3 [shape = 's32[2]{0}', space=sflag, size = 0x8, scoped, tag = 'scoped memory for tpu_custom_call.1']
    %7 = vsyncpa [#allocation3], 0
    %s8 = scalar_lea.sflag [#allocation3], 1
    %9 = vsyncpa %s8, 0
    loop: start=0, step=1, limit=4
    $region2: #{tpu_custom_call.1} parent=1 // loop_pre_header
      _
    $region3: #{tpu_custom_call.1} parent=1 // loop_header
      %s11 = sphi 0, %s15
      %p12 = scmp.ge.s32.totalorder %s11, 4
      %s18 = sphi 0, %s30
      %s19 = sphi 0, %s26
      %s20 = sphi 0, %s18
      %s21 = sphi 0, %s19
      %s22 = sphi 0, %s20
      %s23 = sphi 0, %s21
      %s33 = sphi 0, %s35
      %s36 = sphi 0, %s33
      %s37 = sphi 0, %s36
      %s53 = sphi 0, %s37
      %s59 = sphi 0, %s61
      %s62 = sphi 0, %s59
      %s63 = sphi 0, %s62
      %s79 = sphi 0, %s63
      %s87 = sphi 0, %s89
      %s90 = sphi 0, %s87
      %s91 = sphi 0, %s90
      %s107 = sphi 0, %s91
    $region4: #{tpu_custom_call.1} parent=1 // loop_header_branch
      %14 = sbr.rel (%p12) target = $region8
    $region5: #{tpu_custom_call.1} parent=1 // loop_body
      %s16 = ssub.s32 %s11, 1
      %s17 = ssub.s32 %s11, 2
      %s24 = sadd.s32 1, %s19
      %p25 = scmp.ge.s32.totalorder %s24, 1
      %s26 = scalar_select %p25, 0, %s24
      %s27 = sadd.s32 1, %s18
      %s28 = scalar_select %p25, %s27, %s18
      %p29 = scmp.ge.s32.totalorder %s28, 2
      %s30 = scalar_select %p29, 0, %s28
      %s31 = ssub.s32 %s18, %s30
      %p32 = scmp.eq.s32.totalorder %s31, 0
      %s34 = sadd.s32 %s33, 1
      %s35 = scalar_select %p32, %s33, %s34
      %p38 = pneg %p32
      %p39 = scmp.eq.s32.totalorder %s11, 1
      %p40 = por %p38, %p39
      %p41 = scmp.ne.s32.totalorder %s33, %s36
      %p42 = scmp.eq.s32.totalorder %s11, 0
      %p43 = por %p41, %p42
      %p44 = scmp.ne.s32.totalorder %s33, %s36
      %p45 = scmp.eq.s32.totalorder %s16, 1
      %p46 = por %p44, %p45
      %p47 = scmp.ne.s32.totalorder %s36, %s37
      %p48 = scmp.eq.s32.totalorder %s16, 0
      %p49 = por %p47, %p48
      %p50 = scmp.ne.s32.totalorder %s36, %s37
      %p51 = scmp.eq.s32.totalorder %s17, 1
      %p52 = por %p50, %p51
      %p54 = scmp.ne.s32.totalorder %s37, %s53
      %p55 = scmp.eq.s32.totalorder %s17, 0
      %p56 = por %p54, %p55
      %s57 = ssub.s32 %s19, %s26
      %p58 = scmp.eq.s32.totalorder %s57, 0
      %s60 = sadd.s32 %s59, 1
      %s61 = scalar_select %p58, %s59, %s60
      %p64 = pneg %p58
      %p65 = scmp.eq.s32.totalorder %s11, 1
      %p66 = por %p64, %p65
      %p67 = scmp.ne.s32.totalorder %s59, %s62
      %p68 = scmp.eq.s32.totalorder %s11, 0
      %p69 = por %p67, %p68
      %p70 = scmp.ne.s32.totalorder %s59, %s62
      %p71 = scmp.eq.s32.totalorder %s16, 1
      %p72 = por %p70, %p71
      %p73 = scmp.ne.s32.totalorder %s62, %s63
      %p74 = scmp.eq.s32.totalorder %s16, 0
      %p75 = por %p73, %p74
      %p76 = scmp.ne.s32.totalorder %s62, %s63
      %p77 = scmp.eq.s32.totalorder %s17, 1
      %p78 = por %p76, %p77
      %p80 = scmp.ne.s32.totalorder %s63, %s79
      %p81 = scmp.eq.s32.totalorder %s17, 0
      %p82 = por %p80, %p81
      %s83 = ssub.s32 %s18, %s30
      %s84 = ssub.s32 %s19, %s26
      %s85 = sor.u32 %s83, %s84
      %p86 = scmp.eq.s32.totalorder %s85, 0
      %s88 = sadd.s32 %s87, 1
      %s89 = scalar_select %p86, %s87, %s88
      %p92 = pneg %p86
      %p93 = scmp.eq.s32.totalorder %s11, 1
      %p94 = por %p92, %p93
      %p95 = scmp.ne.s32.totalorder %s87, %s90
      %p96 = scmp.eq.s32.totalorder %s11, 0
      %p97 = por %p95, %p96
      %p98 = scmp.ne.s32.totalorder %s87, %s90
      %p99 = scmp.eq.s32.totalorder %s16, 1
      %p100 = por %p98, %p99
      %p101 = scmp.ne.s32.totalorder %s90, %s91
      %p102 = scmp.eq.s32.totalorder %s16, 0
      %p103 = por %p101, %p102
      %p104 = scmp.ne.s32.totalorder %s90, %s91
      %p105 = scmp.eq.s32.totalorder %s17, 1
      %p106 = por %p104, %p105
      %p108 = scmp.ne.s32.totalorder %s91, %s107
      %p109 = scmp.eq.s32.totalorder %s17, 0
      %p110 = por %p108, %p109
      %p111 = scmp.le.s32.totalorder 1, %s11
      %p112 = scmp.lt.s32.totalorder %s11, 3
      %p113 = pnand %p111, %p112
      %p114 = pneg %p113
      // Predicated region
      $region9: #{tpu_custom_call.1} parent=5 // pred_check
        _
      $region10: #{tpu_custom_call.1} parent=5 // pred_check_branch
        %116 = sbr.rel (%p113) target = $region12
      $region11: #{tpu_custom_call.1} parent=5 // pred_region
        %s117 = ssub.s32 %s11, 1
        // Predicated region
        $region13: #{tpu_custom_call.1} parent=11 // pred_check
          %p118 = pneg %p75
        $region14: #{tpu_custom_call.1} parent=11 // pred_check_branch
          %120 = sbr.rel (%p118) target = $region16
        $region15: #{tpu_custom_call.1} parent=11 // pred_region
          %p121 = scmp.lt.s32.totalorder %s21, 0
          %s122 = scalar_select %p121, %s21, 0
          %s123 = smul.addr %s122, 8
          %s124 = scalar_lea.vmem %s1, %s123
        $region16: #{tpu_custom_call.1} parent=11 // pred_fallthru
          _
      $region12: #{tpu_custom_call.1} parent=5 // pred_fallthru
        _
      %p125 = scmp.lt.s32.totalorder %s11, 2
      // Predicated region
      $region17: #{tpu_custom_call.1} parent=5 // pred_check
        %p126 = pneg %p125
      $region18: #{tpu_custom_call.1} parent=5 // pred_check_branch
        %128 = sbr.rel (%p126) target = $region20
      $region19: #{tpu_custom_call.1} parent=5 // pred_region
        // Predicated region
        $region21: #{tpu_custom_call.1} parent=19 // pred_check
          %p129 = pneg %p43
        $region22: #{tpu_custom_call.1} parent=19 // pred_check_branch
          %131 = sbr.rel (%p129) target = $region24
        $region23: #{tpu_custom_call.1} parent=19 // pred_region
          %s132 = smul.u32 16, %s18
          %p133 = scmp.lt.s32.totalorder %s132, 31
          %s134 = scalar_select %p133, %s132, 31
          %s135 = smul.addr %s134, 8
          %s136 = scalar_lea.vmem %s0, %s135
          %s137 = smul.u32 16, %s18
        $region24: #{tpu_custom_call.1} parent=19 // pred_fallthru
          _
      $region20: #{tpu_custom_call.1} parent=5 // pred_fallthru
        _
      %p138 = scmp.le.s32.totalorder 1, %s11
      %p139 = scmp.lt.s32.totalorder %s11, 3
      %p140 = pnand %p138, %p139
      %p141 = pneg %p140
      // Predicated region
      $region25: #{tpu_custom_call.1} parent=5 // pred_check
        _
      $region26: #{tpu_custom_call.1} parent=5 // pred_check_branch
        %143 = sbr.rel (%p140) target = $region28
      $region27: #{tpu_custom_call.1} parent=5 // pred_region
        %s144 = ssub.s32 %s11, 1
        %s145 = smul.u32 16, %s20
        %p146 = scmp.lt.s32.totalorder %s145, 31
        %s147 = scalar_select %p146, %s145, 31
        %s148 = smul.addr %s147, 8
        %s149 = scalar_lea.vmem %s0, %s148
        %p150 = pneg %p49
        %p151 = pneg %p46
        %p152 = scmp.lt.s32.totalorder %s21, 0
        %s153 = scalar_select %p152, %s21, 0
        %s154 = smul.addr %s153, 8
        %s155 = scalar_lea.vmem %s1, %s154
        %p156 = pneg %p75
        %p157 = pneg %p72
        %p158 = pneg %p103
        %p159 = pneg %p100
        %s160 = sand.u32 %s90, 1
        %s161 = scalar_lea.sflag [#allocation3], %s160
        %s162 = sand.u32 %s90, 1
        %s163 = smul.addr %s162, 64
        %s164 = scalar_lea.vmem [#allocation2], %s163
        %s165 = smul.u32 16, %s20
        %p166 = scmp.lt.s32.totalorder %s165, 31
        %s167 = scalar_select %p166, %s165, 31
        %s168 = smul.addr %s167, 8
        %s169 = scalar_lea.vmem %s0, %s168
        %s170 = smul.u32 16, %s20
        %p171 = scmp.lt.s32.totalorder %s21, 0
        %s172 = scalar_select %p171, %s21, 0
        %s173 = smul.addr %s172, 8
        %s174 = scalar_lea.vmem %s1, %s173
        %s175 = smul.u32 16, %s20
        %v176 = vld [vmem:[%s169] sm:$0xff]
        %v177 = vld [vmem:[%s169 + $0x8] sm:$0xff]
        %v178 = vld [vmem:[%s169 + $0x10] sm:$0xff]
        %v179 = vld [vmem:[%s169 + $0x18] sm:$0xff]
        %v180 = vld [vmem:[%s169 + $0x20] sm:$0xff]
        %v181 = vld [vmem:[%s169 + $0x28] sm:$0xff]
        %v182 = vld [vmem:[%s169 + $0x30] sm:$0xff]
        %v183 = vld [vmem:[%s169 + $0x38] sm:$0xff]
        %v184 = vld [vmem:[%s169 + $0x40] sm:$0xff]
        %v185 = vld [vmem:[%s169 + $0x48] sm:$0xff]
        %v186 = vld [vmem:[%s169 + $0x50] sm:$0xff]
        %v187 = vld [vmem:[%s169 + $0x58] sm:$0xff]
        %v188 = vld [vmem:[%s169 + $0x60] sm:$0xff]
        %v189 = vld [vmem:[%s169 + $0x68] sm:$0xff]
        %v190 = vld [vmem:[%s169 + $0x70] sm:$0xff]
        %v191 = vld [vmem:[%s169 + $0x78] sm:$0xff]
        %v192 = vld [vmem:[%s174] sm:$0xff]
        %v193 = vld [vmem:[%s174 + $0x8] sm:$0xff]
        %v194 = vld [vmem:[%s174 + $0x10] sm:$0xff]
        %v195 = vld [vmem:[%s174 + $0x18] sm:$0xff]
        %v196 = vld [vmem:[%s174 + $0x20] sm:$0xff]
        %v197 = vld [vmem:[%s174 + $0x28] sm:$0xff]
        %v198 = vld [vmem:[%s174 + $0x30] sm:$0xff]
        %v199 = vld [vmem:[%s174 + $0x38] sm:$0xff]
        %vm200 = vcmask 523264
        %v202 = vsel %vm200, %v176, 0
        %v205 = vsel %vm200, %v177, 0
        %v208 = vsel %vm200, %v178, 0
        %v211 = vsel %vm200, %v179, 0
        %v214 = vsel %vm200, %v180, 0
        %v217 = vsel %vm200, %v181, 0
        %v220 = vsel %vm200, %v182, 0
        %v223 = vsel %vm200, %v183, 0
        %v226 = vsel %vm200, %v184, 0
        %v229 = vsel %vm200, %v185, 0
        %v232 = vsel %vm200, %v186, 0
        %v235 = vsel %vm200, %v187, 0
        %v238 = vsel %vm200, %v188, 0
        %v241 = vsel %vm200, %v189, 0
        %v244 = vsel %vm200, %v190, 0
        %v247 = vsel %vm200, %v191, 0
        %249 = vmatpush.msra.mxu0 0.0
        %250 = vmatpush.msra.mxu0 0.0
        %251 = vmatpush.msra.mxu0 0.0
        %252 = vmatpush.msra.mxu0 0.0
        %253 = vmatpush.msra.mxu0 0.0
        %254 = vmatpush.msra.mxu0 0.0
        %255 = vmatpush.msra.mxu0 0.0
        %256 = vmatpush.msra.mxu0 0.0
        %257 = vmatpush.msra.mxu0 %v199
        %258 = vmatpush.msra.mxu0 %v198
        %259 = vmatpush.msra.mxu0 %v197
        %260 = vmatpush.msra.mxu0 %v196
        %261 = vmatpush.msra.mxu0 %v195
        %262 = vmatpush.msra.mxu0 %v194
        %263 = vmatpush.msra.mxu0 %v193
        %264 = vmatpush.msra.mxu0 %v192
        %265 = vmatmul.f32.gmra.mxu0 %v202
        %v266 = vpop.f32.mrf.mxu0
        %v267 = vadd.f32 0.0, %v266
        %268 = vmatmul.f32.gmra.mxu0 %v205
        %v269 = vpop.f32.mrf.mxu0
        %v270 = vadd.f32 0.0, %v269
        %271 = vmatmul.f32.gmra.mxu0 %v208
        %v272 = vpop.f32.mrf.mxu0
        %v273 = vadd.f32 0.0, %v272
        %274 = vmatmul.f32.gmra.mxu0 %v211
        %v275 = vpop.f32.mrf.mxu0
        %v276 = vadd.f32 0.0, %v275
        %277 = vmatmul.f32.gmra.mxu0 %v214
        %v278 = vpop.f32.mrf.mxu0
        %v279 = vadd.f32 0.0, %v278
        %280 = vmatmul.f32.gmra.mxu0 %v217
        %v281 = vpop.f32.mrf.mxu0
        %v282 = vadd.f32 0.0, %v281
        %283 = vmatmul.f32.gmra.mxu0 %v220
        %v284 = vpop.f32.mrf.mxu0
        %v285 = vadd.f32 0.0, %v284
        %286 = vmatmul.f32.gmra.mxu0 %v223
        %v287 = vpop.f32.mrf.mxu0
        %v288 = vadd.f32 0.0, %v287
        %289 = vmatmul.f32.gmra.mxu0 %v226
        %v290 = vpop.f32.mrf.mxu0
        %v291 = vadd.f32 0.0, %v290
        %292 = vmatmul.f32.gmra.mxu0 %v229
        %v293 = vpop.f32.mrf.mxu0
        %v294 = vadd.f32 0.0, %v293
        %295 = vmatmul.f32.gmra.mxu0 %v232
        %v296 = vpop.f32.mrf.mxu0
        %v297 = vadd.f32 0.0, %v296
        %298 = vmatmul.f32.gmra.mxu0 %v235
        %v299 = vpop.f32.mrf.mxu0
        %v300 = vadd.f32 0.0, %v299
        %301 = vmatmul.f32.gmra.mxu0 %v238
        %v302 = vpop.f32.mrf.mxu0
        %v303 = vadd.f32 0.0, %v302
        %304 = vmatmul.f32.gmra.mxu0 %v241
        %v305 = vpop.f32.mrf.mxu0
        %v306 = vadd.f32 0.0, %v305
        %307 = vmatmul.f32.gmra.mxu0 %v244
        %v308 = vpop.f32.mrf.mxu0
        %v309 = vadd.f32 0.0, %v308
        %310 = vmatmul.f32.gmra.mxu0 %v247
        %v311 = vpop.f32.mrf.mxu0
        %v312 = vadd.f32 0.0, %v311
        %313 = vdwg.mxu0
        %v314 = vpack.c.bf16 %v267, %v267
        %v315 = vpack.c.bf16 %v270, %v270
        %v316 = vpack.c.bf16 %v273, %v273
        %v317 = vpack.c.bf16 %v276, %v276
        %v318 = vpack.c.bf16 %v279, %v279
        %v319 = vpack.c.bf16 %v282, %v282
        %v320 = vpack.c.bf16 %v285, %v285
        %v321 = vpack.c.bf16 %v288, %v288
        %v322 = vpack.c.bf16 %v291, %v291
        %v323 = vpack.c.bf16 %v294, %v294
        %v324 = vpack.c.bf16 %v297, %v297
        %v325 = vpack.c.bf16 %v300, %v300
        %v326 = vpack.c.bf16 %v303, %v303
        %v327 = vpack.c.bf16 %v306, %v306
        %v328 = vpack.c.bf16 %v309, %v309
        %v329 = vpack.c.bf16 %v312, %v312
        %330 = vst [vmem:[%s164] sm:$0xf] %v314
        %331 = vst [vmem:[%s164 + $0x4] sm:$0xf] %v315
        %332 = vst [vmem:[%s164 + $0x8] sm:$0xf] %v316
        %333 = vst [vmem:[%s164 + $0xc] sm:$0xf] %v317
        %334 = vst [vmem:[%s164 + $0x10] sm:$0xf] %v318
        %335 = vst [vmem:[%s164 + $0x14] sm:$0xf] %v319
        %336 = vst [vmem:[%s164 + $0x18] sm:$0xf] %v320
        %337 = vst [vmem:[%s164 + $0x1c] sm:$0xf] %v321
        %338 = vst [vmem:[%s164 + $0x20] sm:$0xf] %v322
        %339 = vst [vmem:[%s164 + $0x24] sm:$0xf] %v323
        %340 = vst [vmem:[%s164 + $0x28] sm:$0xf] %v324
        %341 = vst [vmem:[%s164 + $0x2c] sm:$0xf] %v325
        %342 = vst [vmem:[%s164 + $0x30] sm:$0xf] %v326
        %343 = vst [vmem:[%s164 + $0x34] sm:$0xf] %v327
        %344 = vst [vmem:[%s164 + $0x38] sm:$0xf] %v328
        %345 = vst [vmem:[%s164 + $0x3c] sm:$0xf] %v329
        %s346 = sand.u32 %s90, 1
        %s347 = scalar_lea.sflag [#allocation3], %s346
        %s348 = sand.u32 %s90, 1
        %s349 = smul.addr %s348, 64
        %s350 = scalar_lea.vmem [#allocation2], %s349
        // Predicated region
        $region29: #{tpu_custom_call.1} parent=27 // pred_check
          %p351 = pneg %p100
        $region30: #{tpu_custom_call.1} parent=27 // pred_check_branch
          %353 = sbr.rel (%p351) target = $region32
        $region31: #{tpu_custom_call.1} parent=27 // pred_region
          %s354 = smul.u32 16, %s20
          %356 = vsyncadd %s347, 0
          %s357 = sadd.s32 %s21, %s354
          %s358 = smul.addr %s357, 4
          %s359 = scalar_lea.hbm %s2, %s358
          %s360 = sshll.u32 %s350, 4
          %s361 = int_to_ptr.vmem [resolvable:$true] %s360
          %s362 = sshll.u32 %s359, 4
          %s363 = int_to_ptr.hbm [resolvable:$true] %s362
          %368 = dma.vmem_to_hbm [thread:$0]  %s361, 1024, %s363, %s347, 64, 64, 4
        $region32: #{tpu_custom_call.1} parent=27 // pred_fallthru
          _
      $region28: #{tpu_custom_call.1} parent=5 // pred_fallthru
        _
      %p369 = scmp.le.s32.totalorder 2, %s11
      // Predicated region
      $region33: #{tpu_custom_call.1} parent=5 // pred_check
        %p370 = pneg %p369
      $region34: #{tpu_custom_call.1} parent=5 // pred_check_branch
        %372 = sbr.rel (%p370) target = $region36
      $region35: #{tpu_custom_call.1} parent=5 // pred_region
        %s373 = ssub.s32 %s11, 2
        // Predicated region
        $region37: #{tpu_custom_call.1} parent=35 // pred_check
          %p374 = pneg %p106
        $region38: #{tpu_custom_call.1} parent=35 // pred_check_branch
          %376 = sbr.rel (%p374) target = $region40
        $region39: #{tpu_custom_call.1} parent=35 // pred_region
          %s377 = sand.u32 %s91, 1
          %s378 = scalar_lea.sflag [#allocation3], %s377
          %s379 = sand.u32 %s91, 1
          %s380 = smul.addr %s379, 64
          %s381 = scalar_lea.vmem [#allocation2], %s380
          %383 = dma.done %s378, 1024
        $region40: #{tpu_custom_call.1} parent=35 // pred_fallthru
          _
      $region36: #{tpu_custom_call.1} parent=5 // pred_fallthru
        _
    $region6: #{tpu_custom_call.1} parent=1 // loop_footer
      %s15 = sadd.s32 1, %s11
    $region7: #{tpu_custom_call.1} parent=1 // loop_footer_branch
      %10 = sbr.rel target = $region3
    $region8: #{tpu_custom_call.1} parent=1 // loop_exit
      _
    %384 = vsyncpa [#allocation3], 1
    %s385 = scalar_lea.sflag [#allocation3], 1
    %386 = vsyncpa %s385, 1

</llo_original>
